<compile_context>
chip_gen: v6e
topology: v6e:2x2x1
jax: 0.10.0
libtpu: 0.0.40
codegen_flags: <defaults>
</compile_context>

<pallas_src>
import jax
import jax.numpy as jnp
from jax.experimental import pallas as pl
from jax.experimental.pallas import tpu as pltpu


# ----------------------------- helpers -------------------------------------- #
def _round_up(a, b):
    return -(-a // b) * b


def _round_down(a, b):
    return (a // b) * b


# ----------------------------- kernels -------------------------------------- #
def _lora_residual_kernel(x_ref, wa_ref, wb_ref, o_ref):
    # Native-dtype MXU inputs; f32 accumulation only.
    x = x_ref[...]                                                   # (TM, dim)
    h = jnp.dot(x, wa_ref[...], preferred_element_type=jnp.float32)  # (TM, rank)
    p = jnp.dot(h.astype(wb_ref.dtype), wb_ref[...],
                preferred_element_type=jnp.float32)                  # (TM, dim)
    o_ref[...] = (p + x).astype(o_ref.dtype)


def _lora_residual_masked_kernel(mask_ref, x_ref, wa_ref, wb_ref, o_ref):
    x = x_ref[...]                                                   # (TM, dim)
    h = jnp.dot(x, wa_ref[...], preferred_element_type=jnp.float32)
    p = jnp.dot(h.astype(wb_ref.dtype), wb_ref[...],
                preferred_element_type=jnp.float32)
    keep = mask_ref[...] != 0                                        # (TM, 1) bool
    o_ref[...] = jnp.where(keep, (p + x).astype(o_ref.dtype), x)


# ----------------------------- wrapper --------------------------------------- #
def low_rank_adversary(x, wa, wb, attack_mask=None, *, tile_rows=512,
                       compute_dtype=None):
    """x: [batch, seq, dim]; wa: [dim, rank]; wb: [rank, dim];
    attack_mask: optional bool [batch, seq].
    compute_dtype: optional dtype for the MXU inputs (e.g. jnp.bfloat16); by
    default the dots run in the input's native dtype with f32 accumulation."""
    batch, seq, dim = x.shape
    rank = wa.shape[1]
    rows = batch * seq
    out_dtype = x.dtype

    # Pre-cast once in the wrapper so the kernel never re-casts per grid step.
    mm_dtype = x.dtype if compute_dtype is None else compute_dtype
    if compute_dtype is not None:
        x = x.astype(mm_dtype)
    wa = wa.astype(mm_dtype)
    wb = wb.astype(mm_dtype)

    x_bytes = jnp.dtype(x.dtype).itemsize
    o_bytes = jnp.dtype(out_dtype).itemsize
    w_bytes = jnp.dtype(mm_dtype).itemsize
    sublane = max(8, (8 * 4) // x_bytes)        # 8 (f32), 16 (bf16), 32 (int8)

    # --- row-tile selection: as big as fits a conservative VMEM budget (v7x has
    # only 64 MiB physical), while keeping >= 2 grid steps (v7x megacore) and
    # sublane alignment.  Streaming roofline plateaus around TM=512-1024.
    vmem_budget = 48 << 20
    w_vmem = 2 * 2 * dim * rank * w_bytes       # Wa + Wb, double-buffered
    per_row = 2 * dim * (x_bytes + o_bytes)     # in + out tiles, double-buffered
    tm = min(tile_rows, max(sublane, (vmem_budget - w_vmem) // per_row))
    tm = min(tm, _round_up(rows, sublane))
    if rows > sublane:
        tm = min(tm, _round_up(-(-rows // 2), sublane))
    tm = max(sublane, _round_down(tm, sublane))

    rows_pad = _round_up(rows, tm)
    x2 = x.reshape(rows, dim)
    if rows_pad != rows:
        x2 = jnp.pad(x2, ((0, rows_pad - rows), (0, 0)))
    grid = (rows_pad // tm,)

    vmem_needed = w_vmem + per_row * tm + 2 * tm * 4          # + mask tile
    vmem_limit = int(min(64 << 20, max(vmem_needed + (4 << 20), 32 << 20)))
    cparams = pltpu.CompilerParams(
        dimension_semantics=("parallel",),
        vmem_limit_bytes=vmem_limit,
    )

    x_spec = pl.BlockSpec((tm, dim), lambda i: (i, 0))
    wa_spec = pl.BlockSpec((dim, rank), lambda i: (0, 0))
    wb_spec = pl.BlockSpec((rank, dim), lambda i: (0, 0))
    out_spec = pl.BlockSpec((tm, dim), lambda i: (i, 0))
    out_shape = jax.ShapeDtypeStruct((rows_pad, dim), out_dtype)

    if attack_mask is None:
        y2 = pl.pallas_call(
            _lora_residual_kernel,
            grid=grid,
            in_specs=[x_spec, wa_spec, wb_spec],
            out_specs=out_spec,
            out_shape=out_shape,
            compiler_params=cparams,
        )(x2, wa, wb)
    else:
        mask2 = attack_mask.reshape(rows, 1).astype(jnp.int32)
        if rows_pad != rows:
            mask2 = jnp.pad(mask2, ((0, rows_pad - rows), (0, 0)))
        mask_spec = pl.BlockSpec((tm, 1), lambda i: (i, 0))
        y2 = pl.pallas_call(
            _lora_residual_masked_kernel,
            grid=grid,
            in_specs=[mask_spec, x_spec, wa_spec, wb_spec],
            out_specs=out_spec,
            out_shape=out_shape,
            compiler_params=cparams,
        )(mask2, x2, wa, wb)

    if rows_pad != rows:
        y2 = y2[:rows]
    return y2.reshape(batch, seq, dim)


# ----------------------------- init (deterministic) -------------------------- #
def init_low_rank_adversary(key, dim, rank, zero_init=True, dtype=jnp.float32):
    """Mimics nn.Linear(dim, rank, bias=False) / nn.Linear(rank, dim, bias=False).
    Returns (Wa, Wb) already transposed for x @ Wa @ Wb."""
    ka, kb = jax.random.split(key)
    bound_a = 1.0 / jnp.sqrt(dim)
    wa = jax.random.uniform(ka, (dim, rank), dtype, -bound_a, bound_a)
    if zero_init:
        wb = jnp.zeros((rank, dim), dtype)
    else:
        bound_b = 1.0 / jnp.sqrt(rank)
        wb = jax.random.uniform(kb, (rank, dim), dtype, -bound_b, bound_b)
    return wa, wb
    # TODO(synk): lora_B bias=True variant not implemented (module default bias=False).


# ----------------------------- test ------------------------------------------ #
if __name__ == "__main__":
    key = jax.random.PRNGKey(0)
    k_x, k_w, k_m = jax.random.split(key, 3)

    batch, seq, dim, rank = 2, 8, 128, 8
    x = jax.random.normal(k_x, (batch, seq, dim), jnp.float32)
    # zero_init=False so the LoRA branch actually contributes.
    wa, wb = init_low_rank_adversary(k_w, dim, rank, zero_init=False)
    attack_mask = jax.random.bernoulli(k_m, 0.5, (batch, seq))

    # --- path 1: attack_mask is None ---
    y = jax.block_until_ready(low_rank_adversary(x, wa, wb, attack_mask=None))
    y_ref = (x.reshape(-1, dim) @ wa @ wb + x.reshape(-1, dim)).reshape(x.shape)
    assert jnp.allclose(y, y_ref, atol=1e-5, rtol=1e-5)

    # --- path 2: with attack_mask ---
    ym = jax.block_until_ready(low_rank_adversary(x, wa, wb, attack_mask=attack_mask))
    pert = (x.reshape(-1, dim) @ wa @ wb).reshape(x.shape)
    ym_ref = jnp.where(attack_mask[..., None], pert + x, x)
    assert jnp.allclose(ym, ym_ref, atol=1e-5, rtol=1e-5)

    # --- path 3: rows not divisible by the tile (exercises padded last tile) ---
    x_odd = jax.random.normal(k_x, (2, 7, dim), jnp.float32)
    m_odd = jax.random.bernoulli(k_m, 0.5, (2, 7))
    y_odd = jax.block_until_ready(low_rank_adversary(x_odd, wa, wb, attack_mask=m_odd))
    pert_odd = (x_odd.reshape(-1, dim) @ wa @ wb).reshape(x_odd.shape)
    y_odd_ref = jnp.where(m_odd[..., None], pert_odd + x_odd, x_odd)
    assert jnp.allclose(y_odd, y_odd_ref, atol=1e-5, rtol=1e-5)

    # --- zero_init=True semantics (output == x) ---
    wa0, wb0 = init_low_rank_adversary(k_w, dim, rank, zero_init=True)
    y0 = jax.block_until_ready(low_rank_adversary(x, wa0, wb0))
    assert jnp.allclose(y0, x, atol=1e-6)

    print("KERNEL_OK")
</pallas_src>

<mosaic_0001>
module attributes {stable_mosaic.version = 11 : i64} {
  func.func @_lora_residual_kernel(%arg0: i32, %arg1: memref<8x128xf32, #tpu.memory_space<vmem>>, %arg2: memref<128x8xf32, #tpu.memory_space<vmem>>, %arg3: memref<8x128xf32, #tpu.memory_space<vmem>>, %arg4: memref<8x128xf32, #tpu.memory_space<vmem>>) attributes {dimension_semantics = [#tpu.dimension_semantics<parallel>], iteration_bounds = array<i64: 2>, scalar_prefetch = 0 : i64, scratch_operands = 0 : i64, tpu.core_type = #tpu.core_type<tc>, window_params = [{transform_indices = @transform_0, window_bounds = array<i64: 8, 128>}, {pipeline_mode = #tpu.pipeline_mode<synchronous>, transform_indices = @transform_1, window_bounds = array<i64: 128, 8>}, {pipeline_mode = #tpu.pipeline_mode<synchronous>, transform_indices = @transform_2, window_bounds = array<i64: 8, 128>}, {transform_indices = @transform_3, window_bounds = array<i64: 8, 128>}]} {
    %c0 = arith.constant 0 : index
    %c0_0 = arith.constant 0 : index
    %0 = vector.load %arg1[%c0, %c0_0] : memref<8x128xf32, #tpu.memory_space<vmem>>, vector<8x128xf32>
    %c0_1 = arith.constant 0 : index
    %c0_2 = arith.constant 0 : index
    %1 = vector.load %arg2[%c0_1, %c0_2] : memref<128x8xf32, #tpu.memory_space<vmem>>, vector<128x8xf32>
    %cst = arith.constant dense<0.000000e+00> : vector<8x8xf32>
    %2 = tpu.matmul %0, %1, %cst {dimension_numbers = #tpu.dot_dimension_numbers<[1], [0], [0], [1], [0, 0, 1, 1], [], []>} : vector<8x128xf32>, vector<128x8xf32>, vector<8x8xf32> -> vector<8x8xf32>
    %c0_3 = arith.constant 0 : index
    %c0_4 = arith.constant 0 : index
    %3 = vector.load %arg3[%c0_3, %c0_4] : memref<8x128xf32, #tpu.memory_space<vmem>>, vector<8x128xf32>
    %cst_5 = arith.constant dense<0.000000e+00> : vector<8x128xf32>
    %4 = tpu.matmul %2, %3, %cst_5 {dimension_numbers = #tpu.dot_dimension_numbers<[1], [0], [0], [1], [0, 0, 1, 1], [], []>} : vector<8x8xf32>, vector<8x128xf32>, vector<8x128xf32> -> vector<8x128xf32>
    %5 = arith.addf %4, %0 : vector<8x128xf32>
    %c0_6 = arith.constant 0 : index
    %c0_7 = arith.constant 0 : index
    %6 = vector.load %arg4[%c0_6, %c0_7] : memref<8x128xf32, #tpu.memory_space<vmem>>, vector<8x128xf32>
    tpu.vector_store %arg4[%c0_6, %c0_7], %5 {strides = array<i32>} : memref<8x128xf32, #tpu.memory_space<vmem>>, vector<8x128xf32>,
    return
  }
  func.func @transform_0(%arg0: i32) -> (i32, i32) {
    %c0_i32 = arith.constant 0 : i32
    %c0_i32_0 = arith.constant 0 : i32
    return %arg0, %c0_i32 : i32, i32
  }
  func.func @transform_1(%arg0: i32) -> (i32, i32) {
    %c0_i32 = arith.constant 0 : i32
    %c0_i32_0 = arith.constant 0 : i32
    %c0_i32_1 = arith.constant 0 : i32
    return %c0_i32, %c0_i32_0 : i32, i32
  }
  func.func @transform_2(%arg0: i32) -> (i32, i32) {
    %c0_i32 = arith.constant 0 : i32
    %c0_i32_0 = arith.constant 0 : i32
    %c0_i32_1 = arith.constant 0 : i32
    return %c0_i32, %c0_i32_0 : i32, i32
  }
  func.func @transform_3(%arg0: i32) -> (i32, i32) {
    %c0_i32 = arith.constant 0 : i32
    %c0_i32_0 = arith.constant 0 : i32
    return %arg0, %c0_i32 : i32, i32
  }
}

</mosaic_0001>

<llo_original>
// kernel: tpu_custom_call.1
$region0: #{tpu_custom_call.1}
  #allocation0 [shape = 'u32[]', space=smem, size = 0x4, offset = 0x4, fixed_abs, tag = 'smem constant byte address 0x4 - core index']
  #allocation1 [shape = 'u32[144,128]{1,0:T(1,128)}', space=vmem, size = 0x12000, scoped, tag = 'internal scratch']
  %s0 = inlined_call_operand.vmem [shape: f32[16,128], index: 0, kind: input, shape index: {}]
  %s1 = inlined_call_operand.vmem [shape: f32[128,8], index: 1, kind: input, shape index: {}]
  %s2 = inlined_call_operand.vmem [shape: f32[8,128], index: 2, kind: input, shape index: {}]
  %s3 = inlined_call_operand.hbm [shape: f32[16,128], index: 3, kind: output, shape index: {}]
  %s4 = sld [smem:[#allocation0]]
  $region45: #{tpu_custom_call.1} parent=0
    _
  %s6 = ssub.s32 1, %s4
  %s7 = scalar_select 0, %s6, %s4
  $region1: #{tpu_custom_call.1} parent=0
    #allocation2 [shape = 'u8[8192]{0}', space=vmem, size = 0x2000, scoped, tag = 'output window, operand 0']
    #allocation3 [shape = 's32[2]{0}', space=sflag, size = 0x8, scoped, tag = 'scoped memory for tpu_custom_call.1']
    %8 = vsyncpa [#allocation3], 0
    %s9 = scalar_lea.sflag [#allocation3], 1
    %10 = vsyncpa %s9, 0
    loop: start=0, step=1, limit=4
    $region2: #{tpu_custom_call.1} parent=1 // loop_pre_header
      _
    $region3: #{tpu_custom_call.1} parent=1 // loop_header
      %s12 = sphi 0, %s16
      %p13 = scmp.ge.s32.totalorder %s12, 4
      %s22 = sphi 0, %s24
      %s25 = sphi 0, %s22
      %s26 = sphi 0, %s25
      %s42 = sphi 0, %s26
      %s46 = sphi 0, %s46
      %s48 = sphi 0, %s46
      %s49 = sphi 0, %s48
      %s63 = sphi 0, %s49
      %s67 = sphi 0, %s67
      %s69 = sphi 0, %s67
      %s70 = sphi 0, %s69
      %s84 = sphi 0, %s70
      %s90 = sphi 0, %s92
      %s93 = sphi 0, %s90
      %s94 = sphi 0, %s93
      %s110 = sphi 0, %s94
    $region4: #{tpu_custom_call.1} parent=1 // loop_header_branch
      %15 = sbr.rel (%p13) target = $region8
    $region5: #{tpu_custom_call.1} parent=1 // loop_body
      %s17 = ssub.s32 %s12, 1
      %s18 = ssub.s32 %s12, 2
      %s19 = sadd.s32 %s12, 1
      %s20 = ssub.s32 %s12, %s19
      %p21 = scmp.eq.s32.totalorder %s20, 0
      %s23 = sadd.s32 %s22, 1
      %s24 = scalar_select %p21, %s22, %s23
      %p27 = pneg %p21
      %p28 = scmp.eq.s32.totalorder %s12, 1
      %p29 = por %p27, %p28
      %p30 = scmp.ne.s32.totalorder %s22, %s25
      %p31 = scmp.eq.s32.totalorder %s12, 0
      %p32 = por %p30, %p31
      %p33 = scmp.ne.s32.totalorder %s22, %s25
      %p34 = scmp.eq.s32.totalorder %s17, 1
      %p35 = por %p33, %p34
      %p36 = scmp.ne.s32.totalorder %s25, %s26
      %p37 = scmp.eq.s32.totalorder %s17, 0
      %p38 = por %p36, %p37
      %p39 = scmp.ne.s32.totalorder %s25, %s26
      %p40 = scmp.eq.s32.totalorder %s18, 1
      %p41 = por %p39, %p40
      %p43 = scmp.ne.s32.totalorder %s26, %s42
      %p44 = scmp.eq.s32.totalorder %s18, 0
      %p45 = por %p43, %p44
      %s47 = sadd.s32 %s46, 1
      %p50 = scmp.eq.s32.totalorder %s12, 1
      %p51 = scmp.ne.s32.totalorder %s46, %s48
      %p52 = scmp.eq.s32.totalorder %s12, 0
      %p53 = por %p51, %p52
      %p54 = scmp.ne.s32.totalorder %s46, %s48
      %p55 = scmp.eq.s32.totalorder %s17, 1
      %p56 = por %p54, %p55
      %p57 = scmp.ne.s32.totalorder %s48, %s49
      %p58 = scmp.eq.s32.totalorder %s17, 0
      %p59 = por %p57, %p58
      %p60 = scmp.ne.s32.totalorder %s48, %s49
      %p61 = scmp.eq.s32.totalorder %s18, 1
      %p62 = por %p60, %p61
      %p64 = scmp.ne.s32.totalorder %s49, %s63
      %p65 = scmp.eq.s32.totalorder %s18, 0
      %p66 = por %p64, %p65
      %s68 = sadd.s32 %s67, 1
      %p71 = scmp.eq.s32.totalorder %s12, 1
      %p72 = scmp.ne.s32.totalorder %s67, %s69
      %p73 = scmp.eq.s32.totalorder %s12, 0
      %p74 = por %p72, %p73
      %p75 = scmp.ne.s32.totalorder %s67, %s69
      %p76 = scmp.eq.s32.totalorder %s17, 1
      %p77 = por %p75, %p76
      %p78 = scmp.ne.s32.totalorder %s69, %s70
      %p79 = scmp.eq.s32.totalorder %s17, 0
      %p80 = por %p78, %p79
      %p81 = scmp.ne.s32.totalorder %s69, %s70
      %p82 = scmp.eq.s32.totalorder %s18, 1
      %p83 = por %p81, %p82
      %p85 = scmp.ne.s32.totalorder %s70, %s84
      %p86 = scmp.eq.s32.totalorder %s18, 0
      %p87 = por %p85, %p86
      %s88 = ssub.s32 %s12, %s19
      %p89 = scmp.eq.s32.totalorder %s88, 0
      %s91 = sadd.s32 %s90, 1
      %s92 = scalar_select %p89, %s90, %s91
      %p95 = pneg %p89
      %p96 = scmp.eq.s32.totalorder %s12, 1
      %p97 = por %p95, %p96
      %p98 = scmp.ne.s32.totalorder %s90, %s93
      %p99 = scmp.eq.s32.totalorder %s12, 0
      %p100 = por %p98, %p99
      %p101 = scmp.ne.s32.totalorder %s90, %s93
      %p102 = scmp.eq.s32.totalorder %s17, 1
      %p103 = por %p101, %p102
      %p104 = scmp.ne.s32.totalorder %s93, %s94
      %p105 = scmp.eq.s32.totalorder %s17, 0
      %p106 = por %p104, %p105
      %p107 = scmp.ne.s32.totalorder %s93, %s94
      %p108 = scmp.eq.s32.totalorder %s18, 1
      %p109 = por %p107, %p108
      %p111 = scmp.ne.s32.totalorder %s94, %s110
      %p112 = scmp.eq.s32.totalorder %s18, 0
      %p113 = por %p111, %p112
      %p114 = scmp.le.s32.totalorder 1, %s12
      %p115 = scmp.lt.s32.totalorder %s12, 3
      %p116 = pnand %p114, %p115
      %p117 = pneg %p116
      // Predicated region
      $region9: #{tpu_custom_call.1} parent=5 // pred_check
        _
      $region10: #{tpu_custom_call.1} parent=5 // pred_check_branch
        %119 = sbr.rel (%p116) target = $region12
      $region11: #{tpu_custom_call.1} parent=5 // pred_region
        %s120 = ssub.s32 %s12, 1
        // Predicated region
        $region13: #{tpu_custom_call.1} parent=11 // pred_check
          %p121 = pneg %p59
        $region14: #{tpu_custom_call.1} parent=11 // pred_check_branch
          %123 = sbr.rel (%p121) target = $region16
        $region15: #{tpu_custom_call.1} parent=11 // pred_region
          _
        $region16: #{tpu_custom_call.1} parent=11 // pred_fallthru
          _
        // Predicated region
        $region17: #{tpu_custom_call.1} parent=11 // pred_check
          %p124 = pneg %p80
        $region18: #{tpu_custom_call.1} parent=11 // pred_check_branch
          %126 = sbr.rel (%p124) target = $region20
        $region19: #{tpu_custom_call.1} parent=11 // pred_region
          _
        $region20: #{tpu_custom_call.1} parent=11 // pred_fallthru
          _
      $region12: #{tpu_custom_call.1} parent=5 // pred_fallthru
        _
      %p127 = scmp.lt.s32.totalorder %s12, 2
      // Predicated region
      $region21: #{tpu_custom_call.1} parent=5 // pred_check
        %p128 = pneg %p127
      $region22: #{tpu_custom_call.1} parent=5 // pred_check_branch
        %130 = sbr.rel (%p128) target = $region24
      $region23: #{tpu_custom_call.1} parent=5 // pred_region
        // Predicated region
        $region25: #{tpu_custom_call.1} parent=23 // pred_check
          %p131 = pneg %p32
        $region26: #{tpu_custom_call.1} parent=23 // pred_check_branch
          %133 = sbr.rel (%p131) target = $region28
        $region27: #{tpu_custom_call.1} parent=23 // pred_region
          %p134 = scmp.lt.s32.totalorder %s12, 1
          %s135 = scalar_select %p134, %s12, 1
          %s136 = smul.addr %s135, 8
          %s137 = scalar_lea.vmem %s0, %s136
        $region28: #{tpu_custom_call.1} parent=23 // pred_fallthru
          _
      $region24: #{tpu_custom_call.1} parent=5 // pred_fallthru
        _
      %p138 = scmp.le.s32.totalorder 1, %s12
      %p139 = scmp.lt.s32.totalorder %s12, 3
      %p140 = pnand %p138, %p139
      %p141 = pneg %p140
      // Predicated region
      $region29: #{tpu_custom_call.1} parent=5 // pred_check
        _
      $region30: #{tpu_custom_call.1} parent=5 // pred_check_branch
        %143 = sbr.rel (%p140) target = $region32
      $region31: #{tpu_custom_call.1} parent=5 // pred_region
        %s144 = ssub.s32 %s12, 1
        %p145 = scmp.lt.s32.totalorder %s17, 1
        %s146 = scalar_select %p145, %s17, 1
        %s147 = smul.addr %s146, 8
        %s148 = scalar_lea.vmem %s0, %s147
        %p149 = pneg %p38
        %p150 = pneg %p35
        %p151 = pneg %p59
        %p152 = pneg %p56
        %p153 = pneg %p80
        %p154 = pneg %p77
        %p155 = pneg %p106
        %p156 = pneg %p103
        %s157 = sand.u32 %s93, 1
        %s158 = scalar_lea.sflag [#allocation3], %s157
        %s159 = sand.u32 %s93, 1
        %s160 = smul.addr %s159, 8
        %s161 = scalar_lea.vmem [#allocation2], %s160
        %p162 = scmp.lt.s32.totalorder %s17, 1
        %s163 = scalar_select %p162, %s17, 1
        %s164 = smul.addr %s163, 8
        %s165 = scalar_lea.vmem %s0, %s164
        %v166 = vld [vmem:[%s165] sm:$0xff]
        %v167 = vld [vmem:[%s1] sm:$0xff]
        %v168 = vld [vmem:[%s1 + $0x8] sm:$0xff]
        %v169 = vld [vmem:[%s1 + $0x10] sm:$0xff]
        %v170 = vld [vmem:[%s1 + $0x18] sm:$0xff]
        %v171 = vld [vmem:[%s1 + $0x20] sm:$0xff]
        %v172 = vld [vmem:[%s1 + $0x28] sm:$0xff]
        %v173 = vld [vmem:[%s1 + $0x30] sm:$0xff]
        %v174 = vld [vmem:[%s1 + $0x38] sm:$0xff]
        %v175 = vld [vmem:[%s1 + $0x40] sm:$0xff]
        %v176 = vld [vmem:[%s1 + $0x48] sm:$0xff]
        %v177 = vld [vmem:[%s1 + $0x50] sm:$0xff]
        %v178 = vld [vmem:[%s1 + $0x58] sm:$0xff]
        %v179 = vld [vmem:[%s1 + $0x60] sm:$0xff]
        %v180 = vld [vmem:[%s1 + $0x68] sm:$0xff]
        %v181 = vld [vmem:[%s1 + $0x70] sm:$0xff]
        %v182 = vld [vmem:[%s1 + $0x78] sm:$0xff]
        %183 = vmatprep.subr.mxu0 0.0
        %184 = vmatpush1.msra.mxu0 %v182
        %185 = vmatprep.subr.mxu0 0.0
        %186 = vmatpush1.msra.mxu0 %v181
        %187 = vmatprep.subr.mxu0 0.0
        %188 = vmatpush1.msra.mxu0 %v180
        %189 = vmatprep.subr.mxu0 0.0
        %190 = vmatpush1.msra.mxu0 %v179
        %191 = vmatprep.subr.mxu0 0.0
        %192 = vmatpush1.msra.mxu0 %v178
        %193 = vmatprep.subr.mxu0 0.0
        %194 = vmatpush1.msra.mxu0 %v177
        %195 = vmatprep.subr.mxu0 0.0
        %196 = vmatpush1.msra.mxu0 %v176
        %197 = vmatprep.subr.mxu0 0.0
        %198 = vmatpush1.msra.mxu0 %v175
        %199 = vmatprep.subr.mxu0 0.0
        %200 = vmatpush1.msra.mxu0 %v174
        %201 = vmatprep.subr.mxu0 0.0
        %202 = vmatpush1.msra.mxu0 %v173
        %203 = vmatprep.subr.mxu0 0.0
        %204 = vmatpush1.msra.mxu0 %v172
        %205 = vmatprep.subr.mxu0 0.0
        %206 = vmatpush1.msra.mxu0 %v171
        %207 = vmatprep.subr.mxu0 0.0
        %208 = vmatpush1.msra.mxu0 %v170
        %209 = vmatprep.subr.mxu0 0.0
        %210 = vmatpush1.msra.mxu0 %v169
        %211 = vmatprep.subr.mxu0 0.0
        %212 = vmatpush1.msra.mxu0 %v168
        %213 = vmatprep.subr.mxu0 0.0
        %214 = vmatpush1.msra.mxu0 %v167
        %215 = vmatprep.subr.mxu0 0.0
        %216 = vmatpush2.msra.mxu0 0.0
        %217 = vmatprep.subr.mxu0 0.0
        %218 = vmatpush2.msra.mxu0 0.0
        %219 = vmatprep.subr.mxu0 0.0
        %220 = vmatpush2.msra.mxu0 0.0
        %221 = vmatprep.subr.mxu0 0.0
        %222 = vmatpush2.msra.mxu0 0.0
        %223 = vmatprep.subr.mxu0 0.0
        %224 = vmatpush2.msra.mxu0 0.0
        %225 = vmatprep.subr.mxu0 0.0
        %226 = vmatpush2.msra.mxu0 0.0
        %227 = vmatprep.subr.mxu0 0.0
        %228 = vmatpush2.msra.mxu0 0.0
        %229 = vmatprep.subr.mxu0 0.0
        %230 = vmatpush2.msra.mxu0 0.0
        %231 = vmatprep.subr.mxu0 0.0
        %232 = vmatpush2.msra.mxu0 0.0
        %233 = vmatprep.subr.mxu0 0.0
        %234 = vmatpush2.msra.mxu0 0.0
        %235 = vmatprep.subr.mxu0 0.0
        %236 = vmatpush2.msra.mxu0 0.0
        %237 = vmatprep.subr.mxu0 0.0
        %238 = vmatpush2.msra.mxu0 0.0
        %239 = vmatprep.subr.mxu0 0.0
        %240 = vmatpush2.msra.mxu0 0.0
        %241 = vmatprep.subr.mxu0 0.0
        %242 = vmatpush2.msra.mxu0 0.0
        %243 = vmatprep.subr.mxu0 0.0
        %244 = vmatpush2.msra.mxu0 0.0
        %245 = vmatprep.subr.mxu0 0.0
        %246 = vmatpush2.msra.mxu0 0.0
        %247 = vmatprep.mubr.f32.mxu0 0.0
        %248 = vmatmul.mubr.f32.gmra.mxu0 %v166
        %v249 = vpop.f32.mrf.mxu0
        %v250 = vadd.f32 0.0, %v249
        %v251 = vpop.f32.mrf.mxu0
        %252 = vdwg.mxu0
        %v253 = vld [vmem:[%s2] sm:$0xff]
        %vm254 = vcmask 64512
        %v256 = vsel %vm254, %v250, 0
        %258 = vmatprep.subr.mxu0 0.0
        %259 = vmatpush1.msra.mxu0 0.0
        %260 = vmatprep.subr.mxu0 0.0
        %261 = vmatpush1.msra.mxu0 0.0
        %262 = vmatprep.subr.mxu0 0.0
        %263 = vmatpush1.msra.mxu0 0.0
        %264 = vmatprep.subr.mxu0 0.0
        %265 = vmatpush1.msra.mxu0 0.0
        %266 = vmatprep.subr.mxu0 0.0
        %267 = vmatpush1.msra.mxu0 0.0
        %268 = vmatprep.subr.mxu0 0.0
        %269 = vmatpush1.msra.mxu0 0.0
        %270 = vmatprep.subr.mxu0 0.0
        %271 = vmatpush1.msra.mxu0 0.0
        %272 = vmatprep.subr.mxu0 0.0
        %273 = vmatpush1.msra.mxu0 0.0
        %274 = vmatprep.subr.mxu0 0.0
        %275 = vmatpush1.msra.mxu0 0.0
        %276 = vmatprep.subr.mxu0 0.0
        %277 = vmatpush1.msra.mxu0 0.0
        %278 = vmatprep.subr.mxu0 0.0
        %279 = vmatpush1.msra.mxu0 0.0
        %280 = vmatprep.subr.mxu0 0.0
        %281 = vmatpush1.msra.mxu0 0.0
        %282 = vmatprep.subr.mxu0 0.0
        %283 = vmatpush1.msra.mxu0 0.0
        %284 = vmatprep.subr.mxu0 0.0
        %285 = vmatpush1.msra.mxu0 0.0
        %286 = vmatprep.subr.mxu0 0.0
        %287 = vmatpush1.msra.mxu0 0.0
        %288 = vmatprep.subr.mxu0 0.0
        %289 = vmatpush1.msra.mxu0 %v253
        %290 = vmatprep.subr.mxu0 0.0
        %291 = vmatpush2.msra.mxu0 0.0
        %292 = vmatprep.subr.mxu0 0.0
        %293 = vmatpush2.msra.mxu0 0.0
        %294 = vmatprep.subr.mxu0 0.0
        %295 = vmatpush2.msra.mxu0 0.0
        %296 = vmatprep.subr.mxu0 0.0
        %297 = vmatpush2.msra.mxu0 0.0
        %298 = vmatprep.subr.mxu0 0.0
        %299 = vmatpush2.msra.mxu0 0.0
        %300 = vmatprep.subr.mxu0 0.0
        %301 = vmatpush2.msra.mxu0 0.0
        %302 = vmatprep.subr.mxu0 0.0
        %303 = vmatpush2.msra.mxu0 0.0
        %304 = vmatprep.subr.mxu0 0.0
        %305 = vmatpush2.msra.mxu0 0.0
        %306 = vmatprep.subr.mxu0 0.0
        %307 = vmatpush2.msra.mxu0 0.0
        %308 = vmatprep.subr.mxu0 0.0
        %309 = vmatpush2.msra.mxu0 0.0
        %310 = vmatprep.subr.mxu0 0.0
        %311 = vmatpush2.msra.mxu0 0.0
        %312 = vmatprep.subr.mxu0 0.0
        %313 = vmatpush2.msra.mxu0 0.0
        %314 = vmatprep.subr.mxu0 0.0
        %315 = vmatpush2.msra.mxu0 0.0
        %316 = vmatprep.subr.mxu0 0.0
        %317 = vmatpush2.msra.mxu0 0.0
        %318 = vmatprep.subr.mxu0 0.0
        %319 = vmatpush2.msra.mxu0 0.0
        %320 = vmatprep.subr.mxu0 0.0
        %321 = vmatpush2.msra.mxu0 0.0
        %322 = vmatprep.mubr.f32.mxu0 0.0
        %323 = vmatmul.mubr.f32.gmra.mxu0 %v256
        %v324 = vpop.f32.mrf.mxu0
        %v325 = vadd.f32 %v166, %v324
        %v326 = vpop.f32.mrf.mxu0
        %327 = vdwg.mxu0
        %328 = vst [vmem:[%s161] sm:$0xff] %v325
        %s329 = sand.u32 %s93, 1
        %s330 = scalar_lea.sflag [#allocation3], %s329
        %s331 = sand.u32 %s93, 1
        %s332 = smul.addr %s331, 8
        %s333 = scalar_lea.vmem [#allocation2], %s332
        // Predicated region
        $region33: #{tpu_custom_call.1} parent=31 // pred_check
          %p334 = pneg %p103
        $region34: #{tpu_custom_call.1} parent=31 // pred_check_branch
          %336 = sbr.rel (%p334) target = $region36
        $region35: #{tpu_custom_call.1} parent=31 // pred_region
          %s338 = ssub.s32 128, 128
          %339 = vsyncadd %s330, %s338
          %s340 = smul.addr %s17, 128
          %s341 = scalar_lea.hbm %s3, %s340
          %s343 = sshll.u32 %s333, 4
          %s344 = int_to_ptr.vmem [resolvable:$true] %s343
          %346 = dma.vmem_to_hbm [thread:$0]  %s344, 128, %s341, %s330
        $region36: #{tpu_custom_call.1} parent=31 // pred_fallthru
          _
      $region32: #{tpu_custom_call.1} parent=5 // pred_fallthru
        _
      %p347 = scmp.le.s32.totalorder 2, %s12
      // Predicated region
      $region37: #{tpu_custom_call.1} parent=5 // pred_check
        %p348 = pneg %p347
      $region38: #{tpu_custom_call.1} parent=5 // pred_check_branch
        %350 = sbr.rel (%p348) target = $region40
      $region39: #{tpu_custom_call.1} parent=5 // pred_region
        %s351 = ssub.s32 %s12, 2
        // Predicated region
        $region41: #{tpu_custom_call.1} parent=39 // pred_check
          %p352 = pneg %p109
        $region42: #{tpu_custom_call.1} parent=39 // pred_check_branch
          %354 = sbr.rel (%p352) target = $region44
        $region43: #{tpu_custom_call.1} parent=39 // pred_region
          %s355 = sand.u32 %s94, 1
          %s356 = scalar_lea.sflag [#allocation3], %s355
          %s357 = sand.u32 %s94, 1
          %s358 = smul.addr %s357, 8
          %s359 = scalar_lea.vmem [#allocation2], %s358
          %360 = dma.done %s356, 128
        $region44: #{tpu_custom_call.1} parent=39 // pred_fallthru
          _
      $region40: #{tpu_custom_call.1} parent=5 // pred_fallthru
        _
    $region6: #{tpu_custom_call.1} parent=1 // loop_footer
      %s16 = sadd.s32 1, %s12
    $region7: #{tpu_custom_call.1} parent=1 // loop_footer_branch
      %11 = sbr.rel target = $region3
    $region8: #{tpu_custom_call.1} parent=1 // loop_exit
      _
    %361 = vsyncpa [#allocation3], 1
    %s362 = scalar_lea.sflag [#allocation3], 1
    %363 = vsyncpa %s362, 1

</llo_original>
